<compile_context>
chip_gen: v6e
topology: v6e:2x2x1
jax: 0.10.0
libtpu: 0.0.40
codegen_flags: <defaults>
</compile_context>

<pallas_src>
import jax
import jax.numpy as jnp
import numpy as np
from jax.experimental import pallas as pl
from jax.experimental.pallas import tpu as pltpu

_MASK_BIAS = -1000000.0   # matches torch masked_fill_(~mask, -1e6)


def _round_up(x, m):
    return ((x + m - 1) // m) * m


# --------------------------------------------------------------------------- #
# Kernel
# --------------------------------------------------------------------------- #
def attention_kernel(dec_ref, enc_ref, bias_ref, wdec_ref, wmix_ref,
                     out_ref, attw_ref):
    f32 = jnp.float32
    dec = dec_ref[...].astype(f32)       # (TB, H)    streamed bf16/f32 -> f32
    enc = enc_ref[...].astype(f32)       # (TB, S, H) streamed bf16/f32 -> f32
    bias = bias_ref[...]                 # (TB, S)    f32: 0 valid / -1e6 masked

    # attention_scores = bmm(dec, enc^T).squeeze(1) -> (TB, S)
    # q == 1, so VPU broadcast-multiply + lane reduce; MXU stays free.
    raw = jnp.sum(dec[:, None, :] * enc, axis=-1)
    # masked_fill_(~mask, -1e6): replace (not add) where bias is non-zero.
    scores = jnp.where(bias == 0.0, raw, bias)

    # softmax over the sequence dim (f32, exact normalization).
    m = jnp.max(scores, axis=-1, keepdims=True)
    e = jnp.exp(scores - m)
    weights = e / jnp.sum(e, axis=-1, keepdims=True)          # (TB, S)

    # mix = bmm(weights.unsqueeze(1), enc).squeeze(1) -> (TB, H)   (VPU + reduce)
    mix = jnp.sum(weights[:, :, None] * enc, axis=1)

    # output = tanh(linear_out(cat(dec, mix)))  with the concat eliminated:
    # cat([dec, mix]) @ W.T == dec @ W[:, :H].T + mix @ W[:, H:].T
    out = jnp.dot(dec, wdec_ref[...], preferred_element_type=f32)
    out = out + jnp.dot(mix, wmix_ref[...], preferred_element_type=f32)

    out_ref[...] = jnp.tanh(out).astype(out_ref.dtype)
    attw_ref[...] = weights.astype(attw_ref.dtype)


# --------------------------------------------------------------------------- #
# One-time (init-time) weight preparation — hoisted out of the per-step path.
# --------------------------------------------------------------------------- #
def prepare_attention_params(linear_out_weight, dtype=jnp.float32):
    """nn.Linear(hidden+input_dim, input_dim, bias=False) weight: (H, 2H).
    Returns (wdec, wmix), each (H, H), already transposed for x @ W chunks."""
    w = jnp.asarray(linear_out_weight, dtype)
    H = w.shape[0]
    wdec = jnp.asarray(w[:, :H].T, dtype)   # multiplies decoder_output
    wmix = jnp.asarray(w[:, H:].T, dtype)   # multiplies mix
    return wdec, wmix


# --------------------------------------------------------------------------- #
# Tile sizing / VMEM budget (per TPU generation)
# --------------------------------------------------------------------------- #
def _tile_and_vmem(B, S, H, stream_itemsize):
    try:
        vmem_cap = pltpu.get_tpu_info().vmem_capacity_bytes
    except Exception:
        vmem_cap = 64 * 1024 * 1024          # assume the smallest (v7x per-TC)
    budget = vmem_cap // 2                   # headroom for compiler scratch etc.

    # Resident bytes per batch row: double-buffered streamed encoder tile plus
    # the f32 (TB,S,H) temporaries materialized in the kernel body.
    per_row = S * H * (2 * stream_itemsize + 12) + 16 * (S + H)
    max_tb = max(budget // max(per_row, 1), 1)

    if B <= max_tb:
        tb, bp = B, B                        # fast path: one tile, no padding
    else:
        tb = max((max_tb // 8) * 8, 8)       # sublane-aligned batch tile
        bp = _round_up(B, tb)

    tile_bytes = (tb * S * H * (2 * stream_itemsize + 12)   # enc bufs + f32 temps
                  + 4 * tb * (S + H) * 4                    # dec/bias/out/attw bufs
                  + 2 * 2 * H * H * 4)                      # double-buffered weights
    vmem_limit = int(min(max(tile_bytes + (2 << 20), 16 << 20),
                         int(vmem_cap * 0.9)))
    return tb, bp, vmem_limit


# --------------------------------------------------------------------------- #
# Forward (jitted per-step path)
# --------------------------------------------------------------------------- #
@jax.jit
def attention_layer_forward(decoder_output, decoder_hidden, encoder_output,
                            attention_mask, wdec, wmix):
    """decoder_output (B,1,H), decoder_hidden unused (kept for signature parity),
    encoder_output (B,S,H), attention_mask (B,S) bool, wdec/wmix (H,H) f32.
    Returns (output (B,1,H) f32, attention_weights (B,S) f32)."""
    del decoder_hidden
    B, _, H = decoder_output.shape
    S = encoder_output.shape[1]
    f32 = jnp.float32

    itemsize = jnp.dtype(encoder_output.dtype).itemsize
    TB, Bp, vmem_limit = _tile_and_vmem(B, S, H, itemsize)

    dec = decoder_output[:, 0, :]                                   # (B, H)
    enc = encoder_output                                            # (B, S, H)
    bias = jnp.where(attention_mask, 0.0, _MASK_BIAS).astype(f32)   # (B, S)

    if Bp != B:   # only the batch axis is ever padded, and only when needed
        pad = Bp - B
        dec = jnp.pad(dec, ((0, pad), (0, 0)))
        enc = jnp.pad(enc, ((0, pad), (0, 0), (0, 0)))
        bias = jnp.pad(bias, ((0, pad), (0, 0)))

    out_p, attw_p = pl.pallas_call(
        attention_kernel,
        grid=(Bp // TB,),
        in_specs=[
            pl.BlockSpec((TB, H), lambda i: (i, 0)),          # decoder (streamed)
            pl.BlockSpec((TB, S, H), lambda i: (i, 0, 0)),    # encoder (streamed)
            pl.BlockSpec((TB, S), lambda i: (i, 0)),          # mask bias (f32)
            pl.BlockSpec((H, H), lambda i: (0, 0)),           # W[:, :H].T
            pl.BlockSpec((H, H), lambda i: (0, 0)),           # W[:, H:].T
        ],
        out_specs=(
            pl.BlockSpec((TB, H), lambda i: (i, 0)),
            pl.BlockSpec((TB, S), lambda i: (i, 0)),
        ),
        out_shape=(
            jax.ShapeDtypeStruct((Bp, H), f32),
            jax.ShapeDtypeStruct((Bp, S), f32),
        ),
        compiler_params=pltpu.CompilerParams(
            dimension_semantics=("parallel",),
            vmem_limit_bytes=vmem_limit,
        ),
    )(dec, enc, bias, wdec, wmix)

    out = out_p[:B][:, None, :]      # (B, 1, H)
    attw = attw_p[:B]                # (B, S)
    return out, attw


# --------------------------------------------------------------------------- #
# Pure-JAX reference (f32 math)
# --------------------------------------------------------------------------- #
def _reference_forward(decoder_output, encoder_output, attention_mask, weight):
    scores = jnp.einsum('bqd,bkd->bqk', decoder_output, encoder_output)[:, 0, :]
    scores = jnp.where(attention_mask, scores, _MASK_BIAS)
    weights = jax.nn.softmax(scores, axis=-1)
    mix = jnp.einsum('bs,bsh->bh', weights, encoder_output)
    combined = jnp.concatenate([decoder_output[:, 0, :], mix], axis=-1)
    out = jnp.tanh(combined @ weight.T)
    return out[:, None, :], weights


if __name__ == "__main__":
    B, S, H = 2, 8, 32

    key = jax.random.PRNGKey(0)
    k_dec, k_enc, k_hid, k_w = jax.random.split(key, 4)

    decoder_output = jax.random.normal(k_dec, (B, 1, H), dtype=jnp.float32)
    decoder_hidden = jax.random.normal(k_hid, (1, B, H), dtype=jnp.float32)  # unused by forward
    encoder_output = jax.random.normal(k_enc, (B, S, H), dtype=jnp.float32)
    lengths = jnp.array([S, S - 3], dtype=jnp.int32)
    attention_mask = (jnp.arange(S)[None, :] < lengths[:, None])             # (B, S) bool

    # nn.Linear(hidden + input_dim, input_dim, bias=False) -> weight (H, 2H)
    linear_out_weight = (jax.random.normal(k_w, (H, 2 * H), dtype=jnp.float32)
                         * (1.0 / jnp.sqrt(2.0 * H)))

    # one-time weight prep (hoisted out of the per-decoder-step path)
    wdec, wmix = prepare_attention_params(linear_out_weight)

    # Stream activations as bf16 (cast once by the producer / amortized across
    # decoder steps); the kernel upcasts and accumulates in f32.
    dec_bf16 = decoder_output.astype(jnp.bfloat16)
    enc_bf16 = encoder_output.astype(jnp.bfloat16)

    out, attw = attention_layer_forward(dec_bf16, decoder_hidden, enc_bf16,
                                        attention_mask, wdec, wmix)
    jax.block_until_ready((out, attw))

    # apples-to-apples reference: same bf16-rounded inputs, f32 math
    ref_out, ref_attw = _reference_forward(
        dec_bf16.astype(jnp.float32), enc_bf16.astype(jnp.float32),
        attention_mask, linear_out_weight)
    np.testing.assert_allclose(np.asarray(out), np.asarray(ref_out),
                               rtol=2e-3, atol=2e-3)
    np.testing.assert_allclose(np.asarray(attw), np.asarray(ref_attw),
                               rtol=2e-3, atol=2e-3)

    print("KERNEL_OK")
</pallas_src>

<mosaic_0001>
module attributes {stable_mosaic.version = 11 : i64} {
  func.func @attention_kernel(%arg0: i32, %arg1: memref<2x32xbf16, #tpu.memory_space<vmem>>, %arg2: memref<2x8x32xbf16, #tpu.memory_space<vmem>>, %arg3: memref<2x8xf32, #tpu.memory_space<vmem>>, %arg4: memref<32x32xf32, #tpu.memory_space<vmem>>, %arg5: memref<32x32xf32, #tpu.memory_space<vmem>>, %arg6: memref<2x32xf32, #tpu.memory_space<vmem>>, %arg7: memref<2x8xf32, #tpu.memory_space<vmem>>) attributes {dimension_semantics = [#tpu.dimension_semantics<parallel>], iteration_bounds = array<i64: 1>, scalar_prefetch = 0 : i64, scratch_operands = 0 : i64, tpu.core_type = #tpu.core_type<tc>, window_params = [{transform_indices = @transform_0, window_bounds = array<i64: 2, 32>}, {transform_indices = @transform_1, window_bounds = array<i64: 2, 8, 32>}, {transform_indices = @transform_2, window_bounds = array<i64: 2, 8>}, {pipeline_mode = #tpu.pipeline_mode<synchronous>, transform_indices = @transform_3, window_bounds = array<i64: 32, 32>}, {pipeline_mode = #tpu.pipeline_mode<synchronous>, transform_indices = @transform_4, window_bounds = array<i64: 32, 32>}, {transform_indices = @transform_5, window_bounds = array<i64: 2, 32>}, {transform_indices = @transform_6, window_bounds = array<i64: 2, 8>}]} {
    %c0 = arith.constant 0 : index
    %c0_0 = arith.constant 0 : index
    %0 = vector.load %arg1[%c0, %c0_0] : memref<2x32xbf16, #tpu.memory_space<vmem>>, vector<2x32xbf16>
    %1 = arith.extf %0 : vector<2x32xbf16> to vector<2x32xf32>
    %c0_1 = arith.constant 0 : index
    %c0_2 = arith.constant 0 : index
    %c0_3 = arith.constant 0 : index
    %2 = vector.load %arg2[%c0_1, %c0_2, %c0_3] : memref<2x8x32xbf16, #tpu.memory_space<vmem>>, vector<2x8x32xbf16>
    %3 = arith.extf %2 : vector<2x8x32xbf16> to vector<2x8x32xf32>
    %c0_4 = arith.constant 0 : index
    %c0_5 = arith.constant 0 : index
    %4 = vector.load %arg3[%c0_4, %c0_5] : memref<2x8xf32, #tpu.memory_space<vmem>>, vector<2x8xf32>
    %5 = vector.shape_cast %1 : vector<2x32xf32> to vector<2x1x32xf32>
    %6 = vector.broadcast %5 : vector<2x1x32xf32> to vector<2x8x32xf32>
    %7 = arith.mulf %6, %3 : vector<2x8x32xf32>
    %cst = arith.constant dense<0.000000e+00> : vector<2x8xf32>
    %8 = vector.multi_reduction <add>, %7, %cst [2] : vector<2x8x32xf32> to vector<2x8xf32>
    %cst_6 = arith.constant 0.000000e+00 : f32
    %9 = vector.broadcast %cst_6 : f32 to vector<2x8xf32>
    %10 = arith.cmpf oeq, %4, %9 : vector<2x8xf32>
    %11 = arith.select %10, %8, %4 : vector<2x8xi1>, vector<2x8xf32>
    %cst_7 = arith.constant dense<0xFF800000> : vector<2xf32>
    %12 = vector.multi_reduction <maximumf>, %11, %cst_7 [1] : vector<2x8xf32> to vector<2xf32>
    %13 = vector.shape_cast %12 : vector<2xf32> to vector<2x1xf32>
    %14 = vector.broadcast %13 : vector<2x1xf32> to vector<2x8xf32>
    %15 = arith.subf %11, %14 : vector<2x8xf32>
    %16 = math.exp %15 : vector<2x8xf32>
    %cst_8 = arith.constant dense<0.000000e+00> : vector<2xf32>
    %17 = vector.multi_reduction <add>, %16, %cst_8 [1] : vector<2x8xf32> to vector<2xf32>
    %18 = vector.shape_cast %17 : vector<2xf32> to vector<2x1xf32>
    %19 = vector.broadcast %18 : vector<2x1xf32> to vector<2x8xf32>
    %20 = arith.divf %16, %19 : vector<2x8xf32>
    %21 = vector.shape_cast %20 : vector<2x8xf32> to vector<2x8x1xf32>
    %22 = vector.broadcast %21 : vector<2x8x1xf32> to vector<2x8x32xf32>
    %23 = arith.mulf %22, %3 : vector<2x8x32xf32>
    %cst_9 = arith.constant dense<0.000000e+00> : vector<2x32xf32>
    %24 = vector.multi_reduction <add>, %23, %cst_9 [1] : vector<2x8x32xf32> to vector<2x32xf32>
    %c0_10 = arith.constant 0 : index
    %c0_11 = arith.constant 0 : index
    %25 = vector.load %arg4[%c0_10, %c0_11] : memref<32x32xf32, #tpu.memory_space<vmem>>, vector<32x32xf32>
    %cst_12 = arith.constant dense<0.000000e+00> : vector<2x32xf32>
    %26 = tpu.matmul %1, %25, %cst_12 {dimension_numbers = #tpu.dot_dimension_numbers<[1], [0], [0], [1], [0, 0, 1, 1], [], []>} : vector<2x32xf32>, vector<32x32xf32>, vector<2x32xf32> -> vector<2x32xf32>
    %c0_13 = arith.constant 0 : index
    %c0_14 = arith.constant 0 : index
    %27 = vector.load %arg5[%c0_13, %c0_14] : memref<32x32xf32, #tpu.memory_space<vmem>>, vector<32x32xf32>
    %cst_15 = arith.constant dense<0.000000e+00> : vector<2x32xf32>
    %28 = tpu.matmul %24, %27, %cst_15 {dimension_numbers = #tpu.dot_dimension_numbers<[1], [0], [0], [1], [0, 0, 1, 1], [], []>} : vector<2x32xf32>, vector<32x32xf32>, vector<2x32xf32> -> vector<2x32xf32>
    %29 = arith.addf %26, %28 : vector<2x32xf32>
    %30 = math.tanh %29 : vector<2x32xf32>
    %c0_16 = arith.constant 0 : index
    %c0_17 = arith.constant 0 : index
    %31 = vector.load %arg6[%c0_16, %c0_17] : memref<2x32xf32, #tpu.memory_space<vmem>>, vector<2x32xf32>
    tpu.vector_store %arg6[%c0_16, %c0_17], %30 {strides = array<i32>} : memref<2x32xf32, #tpu.memory_space<vmem>>, vector<2x32xf32>,
    %c0_18 = arith.constant 0 : index
    %c0_19 = arith.constant 0 : index
    %32 = vector.load %arg7[%c0_18, %c0_19] : memref<2x8xf32, #tpu.memory_space<vmem>>, vector<2x8xf32>
    tpu.vector_store %arg7[%c0_18, %c0_19], %20 {strides = array<i32>} : memref<2x8xf32, #tpu.memory_space<vmem>>, vector<2x8xf32>,
    return
  }
  func.func @transform_0(%arg0: i32) -> (i32, i32) {
    %c0_i32 = arith.constant 0 : i32
    %c0_i32_0 = arith.constant 0 : i32
    return %arg0, %c0_i32 : i32, i32
  }
  func.func @transform_1(%arg0: i32) -> (i32, i32, i32) {
    %c0_i32 = arith.constant 0 : i32
    %c0_i32_0 = arith.constant 0 : i32
    %c0_i32_1 = arith.constant 0 : i32
    return %arg0, %c0_i32, %c0_i32_0 : i32, i32, i32
  }
  func.func @transform_2(%arg0: i32) -> (i32, i32) {
    %c0_i32 = arith.constant 0 : i32
    %c0_i32_0 = arith.constant 0 : i32
    return %arg0, %c0_i32 : i32, i32
  }
  func.func @transform_3(%arg0: i32) -> (i32, i32) {
    %c0_i32 = arith.constant 0 : i32
    %c0_i32_0 = arith.constant 0 : i32
    %c0_i32_1 = arith.constant 0 : i32
    return %c0_i32, %c0_i32_0 : i32, i32
  }
  func.func @transform_4(%arg0: i32) -> (i32, i32) {
    %c0_i32 = arith.constant 0 : i32
    %c0_i32_0 = arith.constant 0 : i32
    %c0_i32_1 = arith.constant 0 : i32
    return %c0_i32, %c0_i32_0 : i32, i32
  }
  func.func @transform_5(%arg0: i32) -> (i32, i32) {
    %c0_i32 = arith.constant 0 : i32
    %c0_i32_0 = arith.constant 0 : i32
    return %arg0, %c0_i32 : i32, i32
  }
  func.func @transform_6(%arg0: i32) -> (i32, i32) {
    %c0_i32 = arith.constant 0 : i32
    %c0_i32_0 = arith.constant 0 : i32
    return %arg0, %c0_i32 : i32, i32
  }
}

</mosaic_0001>

<llo_original>
// kernel: attention_layer_forward.1
$region0: #{attention_layer_forward.1}
  #allocation0 [shape = 'u32[]', space=smem, size = 0x4, offset = 0x4, fixed_abs, tag = 'smem constant byte address 0x4 - core index']
  #allocation1 [shape = 'u32[144,128]{1,0:T(1,128)}', space=vmem, size = 0x12000, scoped, tag = 'internal scratch']
  %s0 = inlined_call_operand.vmem [shape: bf16[2,32], index: 0, kind: input, shape index: {}]
  %s1 = inlined_call_operand.hbm [shape: bf16[2,8,32], index: 1, kind: input, shape index: {}]
  %s2 = inlined_call_operand.vmem [shape: f32[2,8], index: 2, kind: input, shape index: {}]
  %s3 = inlined_call_operand.hbm [shape: f32[32,32], index: 3, kind: input, shape index: {}]
  %s4 = inlined_call_operand.hbm [shape: f32[32,32], index: 4, kind: input, shape index: {}]
  %s5 = inlined_call_operand.hbm [shape: f32[2,32], index: 5, kind: output, shape index: {0}]
  %s6 = inlined_call_operand.hbm [shape: f32[2,8], index: 6, kind: output, shape index: {1}]
  %7 = xla_tuple %s5, %s6
  %s8 = sld [smem:[#allocation0]]
  $region50: #{attention_layer_forward.1} parent=0
    _
  %s10 = ssub.s32 1, %s8
  %s11 = scalar_select 0, %s10, %s8
  $region1: #{attention_layer_forward.1} parent=0
    #allocation2 [shape = 'u8[4096]{0}', space=vmem, size = 0x1000, scoped, tag = 'input window, operand 1, single buffered']
    #allocation3 [shape = 's32[1]{0}', space=sflag, size = 0x4, scoped, tag = 'scoped memory for attention_layer_forward.1']
    #allocation4 [shape = 's32[1]{0}', space=sflag, size = 0x4, scoped, tag = 'scoped memory for attention_layer_forward.1']
    #allocation5 [shape = 'u8[16384]{0}', space=vmem, size = 0x4000, scoped, tag = 'input window, operand 3, single buffered']
    #allocation6 [shape = 's32[1]{0}', space=sflag, size = 0x4, scoped, tag = 'scoped memory for attention_layer_forward.1']
    #allocation7 [shape = 'u8[16384]{0}', space=vmem, size = 0x4000, scoped, tag = 'input window, operand 4, single buffered']
    #allocation8 [shape = 'u8[1024]{0}', space=vmem, size = 0x400, scoped, tag = 'output window, operand 0, single buffered']
    #allocation9 [shape = 'u8[1024]{0}', space=vmem, size = 0x400, scoped, tag = 'output window, operand 1, single buffered']
    #allocation10 [shape = 's32[1]{0}', space=sflag, size = 0x4, scoped, tag = 'scoped memory for attention_layer_forward.1']
    %12 = vsyncpa [#allocation3], 0
    %13 = vsyncpa [#allocation6], 0
    %14 = vsyncpa [#allocation4], 0
    %15 = vsyncpa [#allocation10], 0
    // Predicated region
    $region2: #{attention_layer_forward.1} parent=1 // pred_check
      _
    $region3: #{attention_layer_forward.1} parent=1 // pred_check_branch
      %17 = sbr.rel (0) target = $region5
    $region4: #{attention_layer_forward.1} parent=1 // pred_region
      _
    $region5: #{attention_layer_forward.1} parent=1 // pred_fallthru
      _
    // Predicated region
    $region6: #{attention_layer_forward.1} parent=1 // pred_check
      _
    $region7: #{attention_layer_forward.1} parent=1 // pred_check_branch
      %19 = sbr.rel (0) target = $region9
    $region8: #{attention_layer_forward.1} parent=1 // pred_region
      %s21 = ssub.s32 128, 128
      %22 = vsyncadd [#allocation3], %s21
      %s23 = sshll.u32 [#allocation2], 4
      %s24 = int_to_ptr.vmem [resolvable:$true] %s23
      %29 = dma.hbm_to_vmem [thread:$0]  %s1, 128, %s24, [#allocation3], 64, 64, 4
    $region9: #{attention_layer_forward.1} parent=1 // pred_fallthru
      _
    // Predicated region
    $region10: #{attention_layer_forward.1} parent=1 // pred_check
      _
    $region11: #{attention_layer_forward.1} parent=1 // pred_check_branch
      %31 = sbr.rel (0) target = $region13
    $region12: #{attention_layer_forward.1} parent=1 // pred_region
      _
    $region13: #{attention_layer_forward.1} parent=1 // pred_fallthru
      _
    // Predicated region
    $region14: #{attention_layer_forward.1} parent=1 // pred_check
      _
    $region15: #{attention_layer_forward.1} parent=1 // pred_check_branch
      %33 = sbr.rel (0) target = $region17
    $region16: #{attention_layer_forward.1} parent=1 // pred_region
      %s35 = ssub.s32 512, 512
      %36 = vsyncadd [#allocation6], %s35
      %s37 = sshll.u32 [#allocation5], 4
      %s38 = int_to_ptr.vmem [resolvable:$true] %s37
      %43 = dma.hbm_to_vmem [thread:$0]  %s3, 512, %s38, [#allocation6], 128, 128, 8
    $region17: #{attention_layer_forward.1} parent=1 // pred_fallthru
      _
    // Predicated region
    $region18: #{attention_layer_forward.1} parent=1 // pred_check
      _
    $region19: #{attention_layer_forward.1} parent=1 // pred_check_branch
      %45 = sbr.rel (0) target = $region21
    $region20: #{attention_layer_forward.1} parent=1 // pred_region
      %s47 = ssub.s32 512, 512
      %48 = vsyncadd [#allocation6], %s47
      %s49 = sshll.u32 [#allocation7], 4
      %s50 = int_to_ptr.vmem [resolvable:$true] %s49
      %55 = dma.hbm_to_vmem [thread:$0]  %s4, 512, %s50, [#allocation6], 128, 128, 8
    $region21: #{attention_layer_forward.1} parent=1 // pred_fallthru
      _
    // Predicated region
    $region22: #{attention_layer_forward.1} parent=1 // pred_check
      _
    $region23: #{attention_layer_forward.1} parent=1 // pred_check_branch
      %57 = sbr.rel (0) target = $region25
    $region24: #{attention_layer_forward.1} parent=1 // pred_region
      %58 = dma.done [#allocation3], 128
    $region25: #{attention_layer_forward.1} parent=1 // pred_fallthru
      _
    // Predicated region
    $region26: #{attention_layer_forward.1} parent=1 // pred_check
      _
    $region27: #{attention_layer_forward.1} parent=1 // pred_check_branch
      %60 = sbr.rel (0) target = $region29
    $region28: #{attention_layer_forward.1} parent=1 // pred_region
      %61 = dma.done [#allocation6], 512
    $region29: #{attention_layer_forward.1} parent=1 // pred_fallthru
      _
    // Predicated region
    $region30: #{attention_layer_forward.1} parent=1 // pred_check
      _
    $region31: #{attention_layer_forward.1} parent=1 // pred_check_branch
      %63 = sbr.rel (0) target = $region33
    $region32: #{attention_layer_forward.1} parent=1 // pred_region
      %64 = dma.done [#allocation6], 512
    $region33: #{attention_layer_forward.1} parent=1 // pred_fallthru
      _
    %v65 = vld [vmem:[%s0] sm:$0x1]
    %v66 = vunpack.c.l.bf16 %v65
    %v67 = vld [vmem:[#allocation2] sm:$0xf]
    %v68 = vld [vmem:[#allocation2 + $0x4] sm:$0xf]
    %v69 = vunpack.c.l.bf16 %v67
    %v70 = vunpack.c.l.bf16 %v68
    %v71 = vld [vmem:[%s2] sm:$0x3]
    %v74 = vunpack.c.l.s4 1966171168
    %v75 = vunpack.c.0.s8 %v74
    %v76 = vlaneseq
    %v77 = vshrl.u32 %v76, 7
    %v78 = vsub.s32 %v75, %v77
    %v79 = vrot.slane %v66, %v78
    %v80 = vcombine.high %v79, %v79
    %v81 = vlaneseq
    %v82 = vshrl.u32 %v81, 7
    %v83 = vsub.s32 0, %v82
    %v84 = vrot.slane %v79, %v83
    %v85 = vlaneseq
    %v86 = vshrl.u32 %v85, 7
    %v87 = vsub.s32 0, %v86
    %v88 = vrot.slane %v80, %v87
    %v91 = vmul.f32 %v84, %v69
    %v92 = vmul.f32 %v88, %v70
    %vm93 = vcmask 261120
    %v94 = vsel %vm93, %v91, 0.0
    %95 = vadd.xlane.f32.xlu0 %v94
    %v96 = vpop.xlane.xlu0 %95
    %v97 = vsel %vm93, %v92, 0.0
    %98 = vadd.xlane.f32.xlu0 %v97
    %v99 = vpop.xlane.xlu0 %98
    %vm100 = vcmp.eq.f32.partialorder %v71, 0.0
    %v103 = vlaneseq
    %v104 = vand.u32 %v103, 127
    %v105 = vlaneseq
    %v106 = vshrl.u32 %v105, 7
    %v107 = vsub.s32 %v104, %v106
    %v108 = vrot.slane %v96, %v107
    %v109 = vlaneseq
    %v110 = vshrl.u32 %v109, 7
    %v111 = vsub.s32 %v104, %v110
    %v112 = vrot.slane %v99, %v111
    %vm113 = vcmask 1041409
    %v114 = vsel %vm113, %v112, %v108
    %v116 = vsel %vm100, %v114, %v71
    %vm117 = vcmask 58368
    %v118 = vsel %vm117, %v116, -inf
    %119 = vmax.xlane.f32.xlu0 %v118
    %v120 = vpop.xlane.xlu0 %119
    %v121 = vsub.f32 %v116, %v120
    %v122 = vmul.f32 %v121, 1.442695
    %v123 = vpow.pop %v122
    %v124 = vsel %vm117, %v123, 0.0
    %125 = vadd.xlane.f32.xlu0 %v124
    %v126 = vpop.xlane.xlu0 %125
    %v127 = vrcp.pop %v126
    %v128 = vmul.f32 %v123, %v127
    %v129 = vlaneseq
    %v130 = vshrl.u32 %v129, 7
    %v131 = vsub.s32 0, %v130
    %v132 = vrot.slane %v128, %v131
    %134 = vbcast.lane.b32.xlu0 %v132, 256
    %v135 = vpop.permute.xlu0 %134
    %v136 = vlaneseq
    %v137 = vshrl.u32 %v136, 7
    %v138 = vsub.s32 1, %v137
    %v139 = vrot.slane %v128, %v138
    %141 = vbcast.lane.b32.xlu0 %v139, 256
    %v142 = vpop.permute.xlu0 %141
    %v143 = vmul.f32 %v135, %v69
    %v144 = vmul.f32 %v142, %v70
    %v145 = vsel %vm93, %v143, 0.0
    %v146 = vrot.slane %v145, 4
    %v147 = vadd.f32 %v145, %v146
    %v148 = vrot.slane %v147, 2
    %v149 = vadd.f32 %v147, %v148
    %v150 = vrot.slane %v149, 1
    %v151 = vadd.f32 %v149, %v150
    %v152 = vsel %vm93, %v144, 0.0
    %v153 = vrot.slane %v152, 4
    %v154 = vadd.f32 %v152, %v153
    %v155 = vrot.slane %v154, 2
    %v156 = vadd.f32 %v154, %v155
    %v157 = vrot.slane %v156, 1
    %v158 = vadd.f32 %v156, %v157
    %v159 = vld [vmem:[#allocation5] sm:$0xff]
    %v160 = vld [vmem:[#allocation5 + $0x8] sm:$0xff]
    %v161 = vld [vmem:[#allocation5 + $0x10] sm:$0xff]
    %v162 = vld [vmem:[#allocation5 + $0x18] sm:$0xff]
    %v163 = vld [vmem:[#allocation7] sm:$0xff]
    %v164 = vld [vmem:[#allocation7 + $0x8] sm:$0xff]
    %v165 = vld [vmem:[#allocation7 + $0x10] sm:$0xff]
    %v166 = vld [vmem:[#allocation7 + $0x18] sm:$0xff]
    %v169 = vsel %vm113, %v158, %v151
    %v170 = vsel %vm93, %v169, 0
    %172 = vmatprep.subr.mxu0 0.0
    %173 = vmatpush1.msra.mxu0 0.0
    %174 = vmatprep.subr.mxu0 0.0
    %175 = vmatpush1.msra.mxu0 0.0
    %176 = vmatprep.subr.mxu0 0.0
    %177 = vmatpush1.msra.mxu0 0.0
    %178 = vmatprep.subr.mxu0 0.0
    %179 = vmatpush1.msra.mxu0 0.0
    %180 = vmatprep.subr.mxu0 0.0
    %181 = vmatpush1.msra.mxu0 0.0
    %182 = vmatprep.subr.mxu0 0.0
    %183 = vmatpush1.msra.mxu0 0.0
    %184 = vmatprep.subr.mxu0 0.0
    %185 = vmatpush1.msra.mxu0 0.0
    %186 = vmatprep.subr.mxu0 0.0
    %187 = vmatpush1.msra.mxu0 0.0
    %188 = vmatprep.subr.mxu0 0.0
    %189 = vmatpush1.msra.mxu0 0.0
    %190 = vmatprep.subr.mxu0 0.0
    %191 = vmatpush1.msra.mxu0 0.0
    %192 = vmatprep.subr.mxu0 0.0
    %193 = vmatpush1.msra.mxu0 0.0
    %194 = vmatprep.subr.mxu0 0.0
    %195 = vmatpush1.msra.mxu0 0.0
    %196 = vmatprep.subr.mxu0 0.0
    %197 = vmatpush1.msra.mxu0 %v166
    %198 = vmatprep.subr.mxu0 0.0
    %199 = vmatpush1.msra.mxu0 %v165
    %200 = vmatprep.subr.mxu0 0.0
    %201 = vmatpush1.msra.mxu0 %v164
    %202 = vmatprep.subr.mxu0 0.0
    %203 = vmatpush1.msra.mxu0 %v163
    %204 = vmatprep.subr.mxu0 0.0
    %205 = vmatpush2.msra.mxu0 0.0
    %206 = vmatprep.subr.mxu0 0.0
    %207 = vmatpush2.msra.mxu0 0.0
    %208 = vmatprep.subr.mxu0 0.0
    %209 = vmatpush2.msra.mxu0 0.0
    %210 = vmatprep.subr.mxu0 0.0
    %211 = vmatpush2.msra.mxu0 0.0
    %212 = vmatprep.subr.mxu0 0.0
    %213 = vmatpush2.msra.mxu0 0.0
    %214 = vmatprep.subr.mxu0 0.0
    %215 = vmatpush2.msra.mxu0 0.0
    %216 = vmatprep.subr.mxu0 0.0
    %217 = vmatpush2.msra.mxu0 0.0
    %218 = vmatprep.subr.mxu0 0.0
    %219 = vmatpush2.msra.mxu0 0.0
    %220 = vmatprep.subr.mxu0 0.0
    %221 = vmatpush2.msra.mxu0 0.0
    %222 = vmatprep.subr.mxu0 0.0
    %223 = vmatpush2.msra.mxu0 0.0
    %224 = vmatprep.subr.mxu0 0.0
    %225 = vmatpush2.msra.mxu0 0.0
    %226 = vmatprep.subr.mxu0 0.0
    %227 = vmatpush2.msra.mxu0 0.0
    %228 = vmatprep.subr.mxu0 0.0
    %229 = vmatpush2.msra.mxu0 0.0
    %230 = vmatprep.subr.mxu0 0.0
    %231 = vmatpush2.msra.mxu0 0.0
    %232 = vmatprep.subr.mxu0 0.0
    %233 = vmatpush2.msra.mxu0 0.0
    %234 = vmatprep.subr.mxu0 0.0
    %235 = vmatpush2.msra.mxu0 0.0
    %236 = vmatprep.mubr.f32.mxu0 0.0
    %237 = vmatmul.mubr.f32.gmra.mxu0 %v170
    %v238 = vpop.f32.mrf.mxu0
    %v239 = vadd.f32 0.0, %v238
    %v240 = vpop.f32.mrf.mxu0
    %241 = vdwg.mxu0
    %v242 = vsel %vm93, %v66, 0
    %244 = vmatprep.subr.mxu0 0.0
    %245 = vmatpush1.msra.mxu0 0.0
    %246 = vmatprep.subr.mxu0 0.0
    %247 = vmatpush1.msra.mxu0 0.0
    %248 = vmatprep.subr.mxu0 0.0
    %249 = vmatpush1.msra.mxu0 0.0
    %250 = vmatprep.subr.mxu0 0.0
    %251 = vmatpush1.msra.mxu0 0.0
    %252 = vmatprep.subr.mxu0 0.0
    %253 = vmatpush1.msra.mxu0 0.0
    %254 = vmatprep.subr.mxu0 0.0
    %255 = vmatpush1.msra.mxu0 0.0
    %256 = vmatprep.subr.mxu0 0.0
    %257 = vmatpush1.msra.mxu0 0.0
    %258 = vmatprep.subr.mxu0 0.0
    %259 = vmatpush1.msra.mxu0 0.0
    %260 = vmatprep.subr.mxu0 0.0
    %261 = vmatpush1.msra.mxu0 0.0
    %262 = vmatprep.subr.mxu0 0.0
    %263 = vmatpush1.msra.mxu0 0.0
    %264 = vmatprep.subr.mxu0 0.0
    %265 = vmatpush1.msra.mxu0 0.0
    %266 = vmatprep.subr.mxu0 0.0
    %267 = vmatpush1.msra.mxu0 0.0
    %268 = vmatprep.subr.mxu0 0.0
    %269 = vmatpush1.msra.mxu0 %v162
    %270 = vmatprep.subr.mxu0 0.0
    %271 = vmatpush1.msra.mxu0 %v161
    %272 = vmatprep.subr.mxu0 0.0
    %273 = vmatpush1.msra.mxu0 %v160
    %274 = vmatprep.subr.mxu0 0.0
    %275 = vmatpush1.msra.mxu0 %v159
    %276 = vmatprep.subr.mxu0 0.0
    %277 = vmatpush2.msra.mxu0 0.0
    %278 = vmatprep.subr.mxu0 0.0
    %279 = vmatpush2.msra.mxu0 0.0
    %280 = vmatprep.subr.mxu0 0.0
    %281 = vmatpush2.msra.mxu0 0.0
    %282 = vmatprep.subr.mxu0 0.0
    %283 = vmatpush2.msra.mxu0 0.0
    %284 = vmatprep.subr.mxu0 0.0
    %285 = vmatpush2.msra.mxu0 0.0
    %286 = vmatprep.subr.mxu0 0.0
    %287 = vmatpush2.msra.mxu0 0.0
    %288 = vmatprep.subr.mxu0 0.0
    %289 = vmatpush2.msra.mxu0 0.0
    %290 = vmatprep.subr.mxu0 0.0
    %291 = vmatpush2.msra.mxu0 0.0
    %292 = vmatprep.subr.mxu0 0.0
    %293 = vmatpush2.msra.mxu0 0.0
    %294 = vmatprep.subr.mxu0 0.0
    %295 = vmatpush2.msra.mxu0 0.0
    %296 = vmatprep.subr.mxu0 0.0
    %297 = vmatpush2.msra.mxu0 0.0
    %298 = vmatprep.subr.mxu0 0.0
    %299 = vmatpush2.msra.mxu0 0.0
    %300 = vmatprep.subr.mxu0 0.0
    %301 = vmatpush2.msra.mxu0 0.0
    %302 = vmatprep.subr.mxu0 0.0
    %303 = vmatpush2.msra.mxu0 0.0
    %304 = vmatprep.subr.mxu0 0.0
    %305 = vmatpush2.msra.mxu0 0.0
    %306 = vmatprep.subr.mxu0 0.0
    %307 = vmatpush2.msra.mxu0 0.0
    %308 = vmatprep.mubr.f32.mxu0 0.0
    %309 = vmatmul.mubr.f32.gmra.mxu0 %v242
    %v310 = vpop.f32.mrf.mxu0
    %v311 = vadd.f32 %v239, %v310
    %v312 = vpop.f32.mrf.mxu0
    %313 = vdwg.mxu0
    %v314 = vtanh.pop %v311
    %vm315 = vcmask 254976
    %316 = vst.msk [vmem:[#allocation8] sm:$0x3] %vm315, %v314
    %317 = vst.msk [vmem:[#allocation9] sm:$0x3] %vm117, %v128
    // Predicated region
    $region34: #{attention_layer_forward.1} parent=1 // pred_check
      _
    $region35: #{attention_layer_forward.1} parent=1 // pred_check_branch
      %319 = sbr.rel (0) target = $region37
    $region36: #{attention_layer_forward.1} parent=1 // pred_region
      %s321 = ssub.s32 32, 32
      %322 = vsyncadd [#allocation4], %s321
      %s324 = sshll.u32 [#allocation8], 4
      %s325 = int_to_ptr.vmem [resolvable:$true] %s324
      %327 = dma.vmem_to_hbm [thread:$0]  %s325, 32, %s5, [#allocation4]
    $region37: #{attention_layer_forward.1} parent=1 // pred_fallthru
      _
    // Predicated region
    $region38: #{attention_layer_forward.1} parent=1 // pred_check
      _
    $region39: #{attention_layer_forward.1} parent=1 // pred_check_branch
      %329 = sbr.rel (0) target = $region41
    $region40: #{attention_layer_forward.1} parent=1 // pred_region
      %s331 = ssub.s32 32, 32
      %332 = vsyncadd [#allocation10], %s331
      %s334 = sshll.u32 [#allocation9], 4
      %s335 = int_to_ptr.vmem [resolvable:$true] %s334
      %337 = dma.vmem_to_hbm [thread:$0]  %s335, 32, %s6, [#allocation10]
    $region41: #{attention_layer_forward.1} parent=1 // pred_fallthru
      _
    // Predicated region
    $region42: #{attention_layer_forward.1} parent=1 // pred_check
      _
    $region43: #{attention_layer_forward.1} parent=1 // pred_check_branch
      %339 = sbr.rel (0) target = $region45
    $region44: #{attention_layer_forward.1} parent=1 // pred_region
      %340 = dma.done [#allocation4], 32
    $region45: #{attention_layer_forward.1} parent=1 // pred_fallthru
      _
    // Predicated region
    $region46: #{attention_layer_forward.1} parent=1 // pred_check
      _
    $region47: #{attention_layer_forward.1} parent=1 // pred_check_branch
      %342 = sbr.rel (0) target = $region49
    $region48: #{attention_layer_forward.1} parent=1 // pred_region
      %343 = dma.done [#allocation10], 32
    $region49: #{attention_layer_forward.1} parent=1 // pred_fallthru
      _
    %344 = vsyncpa [#allocation3], 1
    %345 = vsyncpa [#allocation6], 1
    %346 = vsyncpa [#allocation4], 1
    %347 = vsyncpa [#allocation10], 1

</llo_original>
